<compile_context>
chip_gen: v7x
topology: tpu7x:2x2x1
jax: 0.10.0
libtpu: 0.0.40
codegen_flags: <defaults>
</compile_context>

<pallas_src>
import jax
import jax.numpy as jnp
import numpy as np
from jax.experimental import pallas as pl
from jax.experimental.pallas import tpu as pltpu


def _copy_kernel(x_ref, o_ref):
    # Hot path: straight tile pass-through (pure DMA-bound copy).
    o_ref[...] = x_ref[...]


_LANE_CANDIDATES = (4096, 2048, 1024, 512, 256, 128)


def _chip_params():
    """Per-generation (block_bytes, vmem_limit_bytes, min_grid_steps)."""
    kind = ""
    try:
        kind = jax.devices()[0].device_kind.lower()
    except Exception:
        pass
    if "v7" in kind:
        # 64 MiB physical VMEM: 6 MiB * 4 (in+out, double-buffered) = 24 MiB,
        # 48 MiB scoped limit leaves headroom; >=8 grid steps feed both TCs.
        return 6 << 20, 48 << 20, 8
    if "v6" in kind:
        # 128 MiB physical: 8 MiB * 4 = 32 MiB under an explicit 64 MiB limit.
        return 8 << 20, 64 << 20, 1
    # v5e / unknown: 2 MiB * 4 = 8 MiB stays under the 16 MiB scoped default.
    return 2 << 20, None, 1


def _lane_dense_2d(shape):
    """Flatten to (rows, cols) with cols a large multiple of 128 when possible."""
    total = 1
    for d in shape:
        total *= d
    total = max(total, 1)
    for cols in _LANE_CANDIDATES:
        if total % cols == 0:
            return total // cols, cols
    # No 128-multiple factorization: keep the natural (full-extent) last dim.
    # TODO(synk): huge 1-D buffers with no 128-multiple factorization become a
    # single (1, total) block; split into 128-multiple bulk + remainder if a
    # real workload ever hits this with copy=True.
    if len(shape) >= 2 and shape[-1] > 0:
        return total // shape[-1], shape[-1]
    return 1, total


def _choose_tile_rows(rows, cols, itemsize, block_bytes, min_steps):
    """Largest row tile (multiple of 8, or == rows) honoring block_bytes and min_steps."""
    row_bytes = max(1, cols * itemsize)
    cap = max(8, (block_bytes // row_bytes) // 8 * 8)
    if min_steps > 1 and rows >= 8 * min_steps:
        # Cap tile so the grid has at least min_steps blocks (v7x: 2 TCs need work).
        cap = min(cap, max(8, (-(-rows // min_steps)) // 8 * 8))
    if rows <= cap:
        return rows                      # single full-extent block (always legal)
    for t in range(cap, 7, -8):          # prefer a tile that divides rows exactly
        if rows % t == 0:
            return t
    return cap                           # uneven tail block is masked by Pallas


def _pallas_copy(x):
    itemsize = jnp.dtype(x.dtype).itemsize
    nbytes = x.size * itemsize
    block_bytes, vmem_limit, min_steps = _chip_params()

    orig_shape = x.shape
    rows, cols = _lane_dense_2d(orig_shape)
    x2 = x.reshape(rows, cols)

    tile_r = _choose_tile_rows(rows, cols, itemsize, block_bytes, min_steps)
    grid = (pl.cdiv(rows, tile_r),)

    compiler_kwargs = dict(dimension_semantics=("parallel",))
    if vmem_limit is not None:
        compiler_kwargs["vmem_limit_bytes"] = int(vmem_limit)

    out2 = pl.pallas_call(
        _copy_kernel,
        out_shape=jax.ShapeDtypeStruct((rows, cols), x.dtype),
        grid_spec=pltpu.PrefetchScalarGridSpec(
            num_scalar_prefetch=0,
            grid=grid,
            in_specs=[pl.BlockSpec((tile_r, cols), lambda i: (i, 0))],
            out_specs=pl.BlockSpec((tile_r, cols), lambda i: (i, 0)),
        ),
        # No input_output_aliases: this path is a genuine copy (2*nbytes HBM).
        cost_estimate=pl.CostEstimate(
            flops=0, transcendentals=0, bytes_accessed=2 * int(nbytes)),
        compiler_params=pltpu.CompilerParams(**compiler_kwargs),
    )(x2)
    return out2.reshape(orig_shape)


def identity_custom(x, b=None, *, copy=False):
    """Pallas equivalent of IdentityCustom.forward(x, b) == x.

    Default: returns x unchanged (zero HBM bytes moved — the optimal identity).
    copy=True: streams x through a tiled Pallas copy kernel into a fresh buffer.
    """
    del b  # unused by the reference module
    x = jnp.asarray(x)
    if not copy or x.size == 0:
        return x
    return _pallas_copy(x)


if __name__ == "__main__":
    key = jax.random.PRNGKey(0)
    kx, kb = jax.random.split(key)
    # Small shapes consistent with an NCHW feature map.
    x = jax.random.normal(kx, (2, 4, 16, 16), dtype=jnp.float32)
    b = jax.random.normal(kb, (2, 8), dtype=jnp.float32)  # ignored, like torch

    x_host = np.asarray(jax.device_get(x))

    # Default path: true identity, no kernel launch, zero bytes moved.
    y_fast = identity_custom(x, b)
    assert y_fast is x

    # Force the Pallas copy kernel so it compiles and runs on TPU.
    y = identity_custom(x, b, copy=True)
    jax.block_until_ready(y)

    assert y.shape == x_host.shape and y.dtype == x_host.dtype
    assert np.array_equal(np.asarray(jax.device_get(y)), x_host)
    print("KERNEL_OK")
</pallas_src>

<mosaic_0001>
module attributes {stable_mosaic.version = 11 : i64} {
  func.func @_copy_kernel(%arg0: i32, %arg1: memref<1x2048xf32, #tpu.memory_space<vmem>>, %arg2: memref<1x2048xf32, #tpu.memory_space<vmem>>) attributes {dimension_semantics = [#tpu.dimension_semantics<parallel>], iteration_bounds = array<i64: 1>, scalar_prefetch = 0 : i64, scratch_operands = 0 : i64, tpu.core_type = #tpu.core_type<tc>, window_params = [{transform_indices = @transform_0, window_bounds = array<i64: 1, 2048>}, {transform_indices = @transform_1, window_bounds = array<i64: 1, 2048>}]} {
    %c0 = arith.constant 0 : index
    %c0_0 = arith.constant 0 : index
    %0 = vector.load %arg1[%c0, %c0_0] : memref<1x2048xf32, #tpu.memory_space<vmem>>, vector<1x2048xf32>
    %c0_1 = arith.constant 0 : index
    %c0_2 = arith.constant 0 : index
    %1 = vector.load %arg2[%c0_1, %c0_2] : memref<1x2048xf32, #tpu.memory_space<vmem>>, vector<1x2048xf32>
    tpu.vector_store %arg2[%c0_1, %c0_2], %0 {strides = array<i32>} : memref<1x2048xf32, #tpu.memory_space<vmem>>, vector<1x2048xf32>,
    return
  }
  func.func @transform_0(%arg0: i32) -> (i32, i32) {
    %c0_i32 = arith.constant 0 : i32
    %c0_i32_0 = arith.constant 0 : i32
    return %arg0, %c0_i32 : i32, i32
  }
  func.func @transform_1(%arg0: i32) -> (i32, i32) {
    %c0_i32 = arith.constant 0 : i32
    %c0_i32_0 = arith.constant 0 : i32
    return %arg0, %c0_i32 : i32, i32
  }
}

</mosaic_0001>

<llo_original>
// kernel: tpu_custom_call.1
$region0: #{tpu_custom_call.1}
  #allocation0 [shape = 'u32[]', space=smem, size = 0x4, offset = 0x4, fixed_abs, tag = 'smem constant byte address 0x4 - core index']
  #allocation1 [shape = 'u32[144,128]{1,0:T(1,128)}', space=vmem, size = 0x12000, scoped, tag = 'internal scratch']
  %s0 = inlined_call_operand.hbm [shape: f32[1,2048], index: 0, kind: input, shape index: {}]
  %s1 = inlined_call_operand.hbm [shape: f32[1,2048], index: 1, kind: output, shape index: {}]
  %s2 = sld [smem:[#allocation0]]
  $region18: #{tpu_custom_call.1} parent=0
    _
  %s4 = ssub.s32 1, %s2
  %s5 = scalar_select 0, %s4, %s2
  $region1: #{tpu_custom_call.1} parent=0
    #allocation2 [shape = 'u8[8192]{0}', space=vmem, size = 0x2000, scoped, tag = 'input window, operand 0, single buffered']
    #allocation3 [shape = 's32[1]{0}', space=sflag, size = 0x4, scoped, tag = 'scoped memory for tpu_custom_call.1']
    #allocation4 [shape = 's32[1]{0}', space=sflag, size = 0x4, scoped, tag = 'scoped memory for tpu_custom_call.1']
    #allocation5 [shape = 'u8[8192]{0}', space=vmem, size = 0x2000, scoped, tag = 'output window, operand 0, single buffered']
    %6 = vsyncpa [#allocation3], 0
    %7 = vsyncpa [#allocation4], 0
    // Predicated region
    $region2: #{tpu_custom_call.1} parent=1 // pred_check
      _
    $region3: #{tpu_custom_call.1} parent=1 // pred_check_branch
      %9 = sbr.rel (0) target = $region5
    $region4: #{tpu_custom_call.1} parent=1 // pred_region
      %s11 = ssub.s32 256, 256
      %12 = vsyncadd [#allocation3], %s11
      %s14 = sshll.u32 [#allocation2], 4
      %s15 = int_to_ptr.vmem [resolvable:$true] %s14
      %17 = dma.hbm_to_vmem [thread:$0]  %s0, 256, %s15, [#allocation3]
    $region5: #{tpu_custom_call.1} parent=1 // pred_fallthru
      _
    // Predicated region
    $region6: #{tpu_custom_call.1} parent=1 // pred_check
      _
    $region7: #{tpu_custom_call.1} parent=1 // pred_check_branch
      %19 = sbr.rel (0) target = $region9
    $region8: #{tpu_custom_call.1} parent=1 // pred_region
      %20 = dma.done [#allocation3], 256
    $region9: #{tpu_custom_call.1} parent=1 // pred_fallthru
      _
    %v21 = vld [vmem:[#allocation2] sm:$0xff]
    %v22 = vld [vmem:[#allocation2 + $0x8] sm:$0xff]
    %23 = vst [vmem:[#allocation5] sm:$0xff] %v21
    %24 = vst [vmem:[#allocation5 + $0x8] sm:$0xff] %v22
    // Predicated region
    $region10: #{tpu_custom_call.1} parent=1 // pred_check
      _
    $region11: #{tpu_custom_call.1} parent=1 // pred_check_branch
      %26 = sbr.rel (0) target = $region13
    $region12: #{tpu_custom_call.1} parent=1 // pred_region
      %s28 = ssub.s32 256, 256
      %29 = vsyncadd [#allocation4], %s28
      %s31 = sshll.u32 [#allocation5], 4
      %s32 = int_to_ptr.vmem [resolvable:$true] %s31
      %34 = dma.vmem_to_hbm [thread:$0]  %s32, 256, %s1, [#allocation4]
    $region13: #{tpu_custom_call.1} parent=1 // pred_fallthru
      _
    // Predicated region
    $region14: #{tpu_custom_call.1} parent=1 // pred_check
      _
    $region15: #{tpu_custom_call.1} parent=1 // pred_check_branch
      %36 = sbr.rel (0) target = $region17
    $region16: #{tpu_custom_call.1} parent=1 // pred_region
      %37 = dma.done [#allocation4], 256
    $region17: #{tpu_custom_call.1} parent=1 // pred_fallthru
      _
    %38 = vsyncpa [#allocation3], 1
    %39 = vsyncpa [#allocation4], 1

</llo_original>
